<compile_context>
chip_gen: v7x
topology: tpu7x:2x2x1
jax: 0.10.0
libtpu: 0.0.40
codegen_flags: <defaults>
</compile_context>

<pallas_src>
import math
import functools

import jax
import jax.numpy as jnp
from jax.experimental import pallas as pl
from jax.experimental.pallas import tpu as pltpu

# Set to jnp.float32 for bit-faithful matching of the f32 reference (slower MXU).
_MATMUL_DTYPE = jnp.bfloat16


# ----------------------------------------------------------------------------
# Pallas kernel: TB graphs per grid step.
#   pre-LN -> fused attn/feat MLP (bf16 MXU, f32 acc) -> masked softmax over
#   nodes -> mask + 'add' residual -> attention pooling.
# ----------------------------------------------------------------------------
def _node_block_kernel(
    x_ref,          # (TB, N, Din)      merged [nodes ++ pooled_edges], f32
    cbias_ref,      # (TB, 1, Htot+1)   [:,:,:Htot] per-graph layer-1 bias (cond + LN/bias fold)
                    #                   [:,:,Htot:] per-graph valid-node count (float)
    w1_ref,         # (Din, Htot)       LN-affine-folded fused first layer (bf16)
    w2_ref,         # (Htot, NH+Do)     block-diagonal fused second layer, attn scale folded (bf16)
    b2_ref,         # (1, NH+Do)        attn scale folded (f32)
    new_nodes_ref,  # (TB, N, Do)
    pooled_ref,     # (TB, 1, Do)
    *, dn, n_heads, head_dim, feat_outp_dim, inv_din, eps, do_rsdl,
):
    x = x_ref[...]                               # (TB, N, Din)
    tb, n, din = x.shape
    htot = w1_ref.shape[-1]

    cb = cbias_ref[...]                          # (TB, 1, Htot+1)
    cbias = cb[:, :, :htot]                      # (TB, 1, Htot)
    n_valid = cb[:, :, htot:]                    # (TB, 1, 1)  float valid-node count

    # ---- validity mask rebuilt in-kernel (no (B,N,1) mask DMA stream)
    node_idx = jax.lax.broadcasted_iota(jnp.int32, (tb, n, 1), 1).astype(jnp.float32)
    valid = node_idx < n_valid                   # (TB, N, 1) bool

    # ---- pre-LayerNorm over the merged feature dim (two-pass, centered var;
    #      gamma/beta already folded into w1/cbias)
    mean = jnp.sum(x, axis=-1, keepdims=True) * inv_din
    xc = x - mean
    var = jnp.sum(xc * xc, axis=-1, keepdims=True) * inv_din
    x_hat = xc * jax.lax.rsqrt(var + eps)

    # ---- fused first layer of attn_net & feat_net: one bf16 MXU matmul
    h = jnp.dot(x_hat.reshape(tb * n, din).astype(w1_ref.dtype), w1_ref[...],
                preferred_element_type=jnp.float32)
    h = jax.nn.silu(h.reshape(tb, n, htot) + cbias)

    # ---- fused (block-diagonal) second layer -> [attn logits | feat output]
    out = jnp.dot(h.reshape(tb * n, htot).astype(w2_ref.dtype), w2_ref[...],
                  preferred_element_type=jnp.float32) + b2_ref[...]
    out = out.reshape(tb, n, n_heads + feat_outp_dim)
    s = out[..., :n_heads]                       # logits, already scaled by 1/sqrt(Do)
    f = out[..., n_heads:]                       # (TB, N, Do)

    # ---- masked softmax over the node axis (exact reciprocal; denom is tiny)
    s_masked = jnp.where(valid, s, -jnp.inf)
    mx = jnp.maximum(jnp.max(s_masked, axis=1, keepdims=True), -1e30)  # safe if fully masked
    p = jnp.where(valid, jnp.exp(s - mx), 0.0)
    denom = jnp.sum(p, axis=1, keepdims=True)                          # (TB, 1, NH)
    w = p / jnp.maximum(denom, 1e-30)                                  # 0 weight if empty graph

    # expand per-head weights to the full feature dim (head_dim contiguous repeats)
    if n_heads == 1:
        w_exp = jnp.broadcast_to(w, (tb, n, feat_outp_dim))
    else:
        head_row = jax.lax.broadcasted_iota(jnp.int32, (n_heads, feat_outp_dim), 0)
        head_col = jax.lax.broadcasted_iota(jnp.int32, (n_heads, feat_outp_dim), 1) // head_dim
        expand = (head_row == head_col).astype(jnp.float32)            # (NH, Do) 0/1
        w_exp = jnp.dot(w.reshape(tb * n, n_heads), expand,
                        preferred_element_type=jnp.float32).reshape(tb, n, feat_outp_dim)

    # ---- pass_with_mask padding (padval=0), 'add' residual, attention pooling
    f = jnp.where(valid, f, 0.0)
    if do_rsdl:
        new_nodes = f + x[..., :dn]              # residual reuses the merged input tile
    else:
        new_nodes = f
    new_nodes_ref[...] = new_nodes
    pooled_ref[...] = jnp.sum(new_nodes * w_exp, axis=1, keepdims=True)


# ----------------------------------------------------------------------------
# Generation-aware, padded-shape-aware tiling heuristic
# ----------------------------------------------------------------------------
def _device_profile():
    kind = ""
    try:
        kind = jax.devices()[0].device_kind.lower()
    except Exception:
        pass
    two_tc = any(t in kind for t in ("v7", "v5p", "v4"))
    if two_tc:
        # v7x: 64 MiB physical VMEM, grid sharded over 2 TensorCores.
        return dict(two_tc=True, target_rows=512,
                    budget=12 * 1024 * 1024, vmem_limit=32 * 1024 * 1024)
    # v5e / v6e: single TensorCore, 128 MiB VMEM -> bigger tiles, fewer steps.
    return dict(two_tc=False, target_rows=1024,
                budget=24 * 1024 * 1024, vmem_limit=64 * 1024 * 1024)


def _step_vmem_bytes(tb, *, n, din, htot, do, nh):
    """Lane/sublane-PADDED VMEM estimate for one grid step: double-buffered
    pipeline blocks + resident weights + in-kernel f32 temporaries."""
    pad_l = lambda d: -(-d // 128) * 128
    pad_s = lambda d: -(-d // 8) * 8
    x_blk = tb * pad_s(n) * pad_l(din) * 4
    cb_blk = tb * pad_s(1) * pad_l(htot + 1) * 4
    nn_blk = tb * pad_s(n) * pad_l(do) * 4
    pool_blk = tb * pad_s(1) * pad_l(do) * 4
    blocks = 2 * (x_blk + cb_blk + nn_blk + pool_blk)              # double-buffered
    weights = 2 * (pad_s(din) * pad_l(htot) * 2                    # bf16 w1
                   + pad_s(htot) * pad_l(nh + do) * 2              # bf16 w2
                   + pad_s(1) * pad_l(nh + do) * 4)                # f32 b2
    rows = pad_s(tb * n)
    temps = rows * 4 * (2 * pad_l(din) + 3 * pad_l(htot)
                        + 2 * pad_l(nh + do) + 4 * pad_l(do) + 4 * 128)
    return blocks + weights + temps


def _choose_graphs_per_step(batch, n_nodes, bytes_fn, *, two_tc, target_rows, budget):
    """Largest batch-divisor TB whose padded per-step VMEM fits the budget,
    stopping once TB*N rows reach the target; on 2-TC parts keep >= 2 grid
    steps (preferring an even count) so both TensorCores stay busy."""
    divisors = [d for d in range(1, batch + 1) if batch % d == 0]
    passes = (True, False) if (two_tc and batch >= 2) else (False,)
    for need_even in passes:
        best = None
        for tb in divisors:
            if bytes_fn(tb) > budget:
                break                                   # monotone in tb
            steps = batch // tb
            if two_tc and batch >= 2:
                if steps < 2 or (need_even and steps % 2):
                    continue
            best = tb
            if tb * n_nodes >= target_rows:
                break
        if best is not None:
            return best
    return 1


# ----------------------------------------------------------------------------
# Wrapper
# ----------------------------------------------------------------------------
def node_block_forward(nodes, pooled_edges, mask, globs, ctxt, params, *, n_heads=1):
    B, N, Dn = nodes.shape
    Dp = pooled_edges.shape[-1]
    Din = Dn + Dp
    Do = params["wf2"].shape[-1]
    assert Do % n_heads == 0
    head_dim = Do // n_heads
    do_rsdl = (Do == Dn)          # module disables the 'add' residual if dims differ
    Ha = params["wa1x"].shape[-1]
    Hf = params["wf1x"].shape[-1]
    Htot = Ha + Hf
    f32 = jnp.float32

    # --- wrapper-side preprocessing (small, batched XLA ops) ---
    # single merged feature stream: one DMA, one LN pass, one layer-1 matmul
    x = jnp.concatenate([nodes.astype(f32), pooled_edges.astype(f32)], axis=-1)  # (B, N, Din)

    # fuse attn/feat first layers along the output dim; fold the LN affine in
    w1_raw = jnp.concatenate([params["wa1x"], params["wf1x"]], axis=1)           # (Din, Htot)
    w1 = (params["gamma"].reshape(Din, 1) * w1_raw).astype(_MATMUL_DTYPE)        # gamma fold
    b1 = (jnp.concatenate([params["ba1"], params["bf1"]], axis=1)
          + params["beta"] @ w1_raw)                                             # beta fold (1, Htot)

    # per-graph conditional contribution: one batched matmul for all B graphs
    cond = jnp.concatenate([globs, ctxt], axis=-1).astype(f32)                   # (B, Dcond)
    w1c = jnp.concatenate([params["wa1c"], params["wf1c"]], axis=1)              # (Dcond, Htot)
    cbias = cond @ w1c + b1                                                      # (B, Htot)

    # pack the per-graph valid-node count into the spare (lane-padded) column.
    # NOTE: assumes the standard right-padded (prefix-valid) GraphBatch mask.
    lengths = jnp.sum(mask.astype(f32), axis=-1, keepdims=True)                  # (B, 1)
    cbias = jnp.concatenate([cbias, lengths], axis=-1)[:, None, :]               # (B, 1, Htot+1)

    # block-diagonal fused second layer -> [attn logits | feat out];
    # fold the 1/sqrt(feat_outp_dim) attention scale into wa2/ba2
    scale = 1.0 / math.sqrt(Do)
    w2 = jnp.zeros((Htot, n_heads + Do), f32)
    w2 = (w2.at[:Ha, :n_heads].set(params["wa2"] * scale)
            .at[Ha:, n_heads:].set(params["wf2"])).astype(_MATMUL_DTYPE)
    b2 = jnp.concatenate([params["ba2"] * scale, params["bf2"]], axis=1).astype(f32)  # (1, NH+Do)

    # --- tiling: graphs per grid step ---
    prof = _device_profile()
    bytes_fn = functools.partial(_step_vmem_bytes, n=N, din=Din, htot=Htot, do=Do, nh=n_heads)
    TB = _choose_graphs_per_step(B, N, bytes_fn, two_tc=prof["two_tc"],
                                 target_rows=prof["target_rows"], budget=prof["budget"])
    vmem_cap = 48 * 1024 * 1024 if prof["two_tc"] else 100 * 1024 * 1024
    vmem_limit = min(vmem_cap, max(prof["vmem_limit"], bytes_fn(TB) + 4 * 1024 * 1024))

    kernel = functools.partial(
        _node_block_kernel,
        dn=Dn, n_heads=n_heads, head_dim=head_dim, feat_outp_dim=Do,
        inv_din=float(1.0 / Din), eps=1e-5, do_rsdl=do_rsdl,
    )

    def batched(shape):   # per-step blocks of TB graphs; grid indexes the batch
        nd = len(shape)
        return pl.BlockSpec((TB,) + shape, lambda b, nd=nd: (b,) + (0,) * nd)

    def full(arr):        # grid-invariant weights: whole array every step (KB-scale)
        nd = arr.ndim
        return pl.BlockSpec(arr.shape, lambda b, nd=nd: (0,) * nd)

    in_specs = [
        batched((N, Din)),          # merged nodes ++ pooled_edges (also the residual)
        batched((1, Htot + 1)),     # per-graph conditional bias + valid-node count
        full(w1), full(w2), full(b2),
    ]
    out_specs = [
        pl.BlockSpec((TB, N, Do), lambda b: (b, 0, 0)),
        pl.BlockSpec((TB, 1, Do), lambda b: (b, 0, 0)),
    ]
    out_shape = [
        jax.ShapeDtypeStruct((B, N, Do), f32),
        jax.ShapeDtypeStruct((B, 1, Do), f32),
    ]

    new_nodes, pooled = pl.pallas_call(
        kernel,
        grid=(B // TB,),
        in_specs=in_specs,
        out_specs=out_specs,
        out_shape=out_shape,
        compiler_params=pltpu.CompilerParams(
            dimension_semantics=("parallel",),
            vmem_limit_bytes=int(vmem_limit),
        ),
    )(x, cbias, w1, w2, b2)
    return new_nodes, pooled[:, 0, :]


# ----------------------------------------------------------------------------
# Pure-JAX reference (mirrors the PyTorch forward) for a correctness check
# ----------------------------------------------------------------------------
def node_block_reference(nodes, pooled_edges, mask, globs, ctxt, params, *, n_heads=1):
    x = jnp.concatenate([nodes, pooled_edges], axis=-1)
    Do = params["wf2"].shape[-1]
    head_dim = Do // n_heads
    mean = jnp.mean(x, -1, keepdims=True)
    var = jnp.mean((x - mean) ** 2, -1, keepdims=True)
    x_ln = (x - mean) / jnp.sqrt(var + 1e-5) * params["gamma"][0] + params["beta"][0]
    cond = jnp.concatenate([globs, ctxt], axis=-1)
    m = mask.astype(jnp.float32)[..., None]

    ha = jax.nn.silu(x_ln @ params["wa1x"] + (cond @ params["wa1c"])[:, None, :] + params["ba1"])
    a = ha @ params["wa2"] + params["ba2"]
    s = jnp.where(m > 0, a / jnp.sqrt(jnp.float32(Do)), -jnp.inf)
    w = jnp.nan_to_num(jax.nn.softmax(s, axis=-2))
    w_exp = jnp.repeat(w, head_dim, axis=-1)

    hf = jax.nn.silu(x_ln @ params["wf1x"] + (cond @ params["wf1c"])[:, None, :] + params["bf1"])
    f = hf @ params["wf2"] + params["bf2"]
    f = jnp.where(m > 0, f, 0.0)
    new_nodes = f + nodes
    pooled = jnp.sum(new_nodes * w_exp, axis=-2)
    return new_nodes, pooled


# ----------------------------------------------------------------------------
# Main
# ----------------------------------------------------------------------------
if __name__ == "__main__":
    # NodeBlock(inpt_dim=[3, 4, 5], pooled_edge_dim=6, ctxt_dim=2,
    #           pool_type='attn', rsdl_type='add',
    #           feat_kwargs.outp_dim=4, attn_kwargs.outp_dim=1)
    B, N = 4, 8
    Dn, Dp, Dg, Dc = 4, 6, 5, 2
    Din = Dn + Dp              # feat_inpt_dim
    Do = 4                     # feat_outp_dim (== Dn so the 'add' residual is on)
    NH = 1                     # n_heads
    H = 32                     # synthetic MLP hidden width

    key = jax.random.PRNGKey(0)
    ks = jax.random.split(key, 16)

    nodes = jax.random.normal(ks[0], (B, N, Dn), jnp.float32)
    pooled_edges = jax.random.normal(ks[1], (B, N, Dp), jnp.float32)
    globs = jax.random.normal(ks[2], (B, Dg), jnp.float32)
    ctxt = jax.random.normal(ks[3], (B, Dc), jnp.float32)
    lengths = jnp.array([8, 5, 3, 7])
    mask = jnp.arange(N)[None, :] < lengths[:, None]            # (B, N) bool, right-padded

    def lin(k, fan_in, shape):
        return jax.random.normal(k, shape, jnp.float32) / math.sqrt(fan_in)

    Dcond = Dg + Dc
    params = {
        "gamma": 1.0 + 0.1 * jax.random.normal(ks[4], (1, Din), jnp.float32),
        "beta": 0.1 * jax.random.normal(ks[5], (1, Din), jnp.float32),
        # attn_net: (Din + Dcond) -> H -> NH
        "wa1x": lin(ks[6], Din + Dcond, (Din, H)),
        "wa1c": lin(ks[7], Din + Dcond, (Dcond, H)),
        "ba1": 0.01 * jax.random.normal(ks[8], (1, H), jnp.float32),
        "wa2": lin(ks[9], H, (H, NH)),
        "ba2": 0.01 * jax.random.normal(ks[10], (1, NH), jnp.float32),
        # feat_net: (Din + Dcond) -> H -> Do
        "wf1x": lin(ks[11], Din + Dcond, (Din, H)),
        "wf1c": lin(ks[12], Din + Dcond, (Dcond, H)),
        "bf1": 0.01 * jax.random.normal(ks[13], (1, H), jnp.float32),
        "wf2": lin(ks[14], H, (H, Do)),
        "bf2": 0.01 * jax.random.normal(ks[15], (1, Do), jnp.float32),
    }

    new_nodes, pooled = node_block_forward(
        nodes, pooled_edges, mask, globs, ctxt, params, n_heads=NH)
    jax.block_until_ready((new_nodes, pooled))

    ref_nodes, ref_pooled = node_block_reference(
        nodes, pooled_edges, mask, globs, ctxt, params, n_heads=NH)

    assert new_nodes.shape == (B, N, Do) and pooled.shape == (B, Do)
    # tolerance accounts for bf16 MXU operands (f32 accumulation) in the kernel
    assert jnp.allclose(new_nodes, ref_nodes, rtol=4e-2, atol=4e-2)
    assert jnp.allclose(pooled, ref_pooled, rtol=4e-2, atol=4e-2)

    print("KERNEL_OK")
</pallas_src>

<mosaic_0001>
module attributes {stable_mosaic.version = 11 : i64} {
  func.func @_node_block_kernel(%arg0: i32, %arg1: memref<4x8x10xf32, #tpu.memory_space<vmem>>, %arg2: memref<4x1x65xf32, #tpu.memory_space<vmem>>, %arg3: memref<10x64xbf16, #tpu.memory_space<vmem>>, %arg4: memref<64x5xbf16, #tpu.memory_space<vmem>>, %arg5: memref<1x5xf32, #tpu.memory_space<vmem>>, %arg6: memref<4x8x4xf32, #tpu.memory_space<vmem>>, %arg7: memref<4x1x4xf32, #tpu.memory_space<vmem>>) attributes {dimension_semantics = [#tpu.dimension_semantics<parallel>], iteration_bounds = array<i64: 1>, scalar_prefetch = 0 : i64, scratch_operands = 0 : i64, tpu.core_type = #tpu.core_type<tc>, window_params = [{transform_indices = @transform_0, window_bounds = array<i64: 4, 8, 10>}, {transform_indices = @transform_1, window_bounds = array<i64: 4, 1, 65>}, {pipeline_mode = #tpu.pipeline_mode<synchronous>, transform_indices = @transform_2, window_bounds = array<i64: 10, 64>}, {pipeline_mode = #tpu.pipeline_mode<synchronous>, transform_indices = @transform_3, window_bounds = array<i64: 64, 5>}, {pipeline_mode = #tpu.pipeline_mode<synchronous>, transform_indices = @transform_4, window_bounds = array<i64: 1, 5>}, {transform_indices = @transform_5, window_bounds = array<i64: 4, 8, 4>}, {transform_indices = @transform_6, window_bounds = array<i64: 4, 1, 4>}]} {
    %c0 = arith.constant 0 : index
    %c0_0 = arith.constant 0 : index
    %c0_1 = arith.constant 0 : index
    %0 = vector.load %arg1[%c0, %c0_0, %c0_1] : memref<4x8x10xf32, #tpu.memory_space<vmem>>, vector<4x8x10xf32>
    %c0_2 = arith.constant 0 : index
    %c0_3 = arith.constant 0 : index
    %c0_4 = arith.constant 0 : index
    %1 = vector.load %arg2[%c0_2, %c0_3, %c0_4] : memref<4x1x65xf32, #tpu.memory_space<vmem>>, vector<4x1x65xf32>
    %2 = vector.extract_strided_slice %1 {offsets = [0, 0, 0], sizes = [4, 1, 64], strides = [1, 1, 1]} : vector<4x1x65xf32> to vector<4x1x64xf32>
    %3 = vector.extract_strided_slice %1 {offsets = [0, 0, 64], sizes = [4, 1, 1], strides = [1, 1, 1]} : vector<4x1x65xf32> to vector<4x1x1xf32>
    %4 = tpu.iota {dimensions = array<i32: 1>} : vector<4x8x1xi32>
    %5 = arith.sitofp %4 : vector<4x8x1xi32> to vector<4x8x1xf32>
    %6 = vector.broadcast %3 : vector<4x1x1xf32> to vector<4x8x1xf32>
    %7 = arith.cmpf olt, %5, %6 : vector<4x8x1xf32>
    %cst = arith.constant dense<0.000000e+00> : vector<4x8xf32>
    %8 = vector.multi_reduction <add>, %0, %cst [2] : vector<4x8x10xf32> to vector<4x8xf32>
    %9 = vector.shape_cast %8 : vector<4x8xf32> to vector<4x8x1xf32>
    %cst_5 = arith.constant 1.000000e-01 : f32
    %10 = vector.broadcast %cst_5 : f32 to vector<4x8x1xf32>
    %11 = arith.mulf %9, %10 : vector<4x8x1xf32>
    %12 = vector.broadcast %11 : vector<4x8x1xf32> to vector<4x8x10xf32>
    %13 = arith.subf %0, %12 : vector<4x8x10xf32>
    %14 = arith.mulf %13, %13 : vector<4x8x10xf32>
    %cst_6 = arith.constant dense<0.000000e+00> : vector<4x8xf32>
    %15 = vector.multi_reduction <add>, %14, %cst_6 [2] : vector<4x8x10xf32> to vector<4x8xf32>
    %16 = vector.shape_cast %15 : vector<4x8xf32> to vector<4x8x1xf32>
    %cst_7 = arith.constant 1.000000e-01 : f32
    %17 = vector.broadcast %cst_7 : f32 to vector<4x8x1xf32>
    %18 = arith.mulf %16, %17 : vector<4x8x1xf32>
    %cst_8 = arith.constant 9.99999974E-6 : f32
    %19 = vector.broadcast %cst_8 : f32 to vector<4x8x1xf32>
    %20 = arith.addf %18, %19 : vector<4x8x1xf32>
    %21 = math.rsqrt %20 : vector<4x8x1xf32>
    %22 = vector.broadcast %21 : vector<4x8x1xf32> to vector<4x8x10xf32>
    %23 = arith.mulf %13, %22 : vector<4x8x10xf32>
    %24 = vector.shape_cast %23 : vector<4x8x10xf32> to vector<32x10xf32>
    %25 = arith.truncf %24 : vector<32x10xf32> to vector<32x10xbf16>
    %c0_9 = arith.constant 0 : index
    %c0_10 = arith.constant 0 : index
    %26 = vector.load %arg3[%c0_9, %c0_10] : memref<10x64xbf16, #tpu.memory_space<vmem>>, vector<10x64xbf16>
    %cst_11 = arith.constant dense<0.000000e+00> : vector<32x64xf32>
    %27 = tpu.matmul %25, %26, %cst_11 {dimension_numbers = #tpu.dot_dimension_numbers<[1], [0], [0], [1], [0, 0, 1, 1], [], []>} : vector<32x10xbf16>, vector<10x64xbf16>, vector<32x64xf32> -> vector<32x64xf32>
    %28 = vector.shape_cast %27 : vector<32x64xf32> to vector<4x8x64xf32>
    %29 = vector.broadcast %2 : vector<4x1x64xf32> to vector<4x8x64xf32>
    %30 = arith.addf %28, %29 : vector<4x8x64xf32>
    %31 = arith.negf %30 : vector<4x8x64xf32>
    %32 = math.exp %31 : vector<4x8x64xf32>
    %cst_12 = arith.constant 1.000000e+00 : f32
    %33 = vector.broadcast %cst_12 : f32 to vector<4x8x64xf32>
    %34 = arith.addf %33, %32 : vector<4x8x64xf32>
    %35 = arith.divf %33, %34 : vector<4x8x64xf32>
    %36 = arith.mulf %30, %35 : vector<4x8x64xf32>
    %37 = vector.shape_cast %36 : vector<4x8x64xf32> to vector<32x64xf32>
    %38 = arith.truncf %37 : vector<32x64xf32> to vector<32x64xbf16>
    %c0_13 = arith.constant 0 : index
    %c0_14 = arith.constant 0 : index
    %39 = vector.load %arg4[%c0_13, %c0_14] : memref<64x5xbf16, #tpu.memory_space<vmem>>, vector<64x5xbf16>
    %cst_15 = arith.constant dense<0.000000e+00> : vector<32x5xf32>
    %40 = tpu.matmul %38, %39, %cst_15 {dimension_numbers = #tpu.dot_dimension_numbers<[1], [0], [0], [1], [0, 0, 1, 1], [], []>} : vector<32x64xbf16>, vector<64x5xbf16>, vector<32x5xf32> -> vector<32x5xf32>
    %c0_16 = arith.constant 0 : index
    %c0_17 = arith.constant 0 : index
    %41 = vector.load %arg5[%c0_16, %c0_17] : memref<1x5xf32, #tpu.memory_space<vmem>>, vector<1x5xf32>
    %42 = vector.broadcast %41 : vector<1x5xf32> to vector<32x5xf32>
    %43 = arith.addf %40, %42 : vector<32x5xf32>
    %44 = vector.shape_cast %43 : vector<32x5xf32> to vector<4x8x5xf32>
    %45 = vector.extract_strided_slice %44 {offsets = [0, 0, 0], sizes = [4, 8, 1], strides = [1, 1, 1]} : vector<4x8x5xf32> to vector<4x8x1xf32>
    %46 = vector.extract_strided_slice %44 {offsets = [0, 0, 1], sizes = [4, 8, 4], strides = [1, 1, 1]} : vector<4x8x5xf32> to vector<4x8x4xf32>
    %cst_18 = arith.constant 0xFF800000 : f32
    %47 = vector.broadcast %cst_18 : f32 to vector<4x8x1xf32>
    %48 = arith.select %7, %45, %47 : vector<4x8x1xi1>, vector<4x8x1xf32>
    %cst_19 = arith.constant dense<0xFF800000> : vector<4x1xf32>
    %49 = vector.multi_reduction <maximumf>, %48, %cst_19 [1] : vector<4x8x1xf32> to vector<4x1xf32>
    %50 = vector.shape_cast %49 : vector<4x1xf32> to vector<4x1x1xf32>
    %cst_20 = arith.constant -1.000000e+30 : f32
    %51 = vector.broadcast %cst_20 : f32 to vector<4x1x1xf32>
    %52 = arith.maximumf %50, %51 : vector<4x1x1xf32>
    %53 = vector.broadcast %52 : vector<4x1x1xf32> to vector<4x8x1xf32>
    %54 = arith.subf %45, %53 : vector<4x8x1xf32>
    %55 = math.exp %54 : vector<4x8x1xf32>
    %cst_21 = arith.constant 0.000000e+00 : f32
    %56 = vector.broadcast %cst_21 : f32 to vector<4x8x1xf32>
    %57 = arith.select %7, %55, %56 : vector<4x8x1xi1>, vector<4x8x1xf32>
    %cst_22 = arith.constant dense<0.000000e+00> : vector<4x1xf32>
    %58 = vector.multi_reduction <add>, %57, %cst_22 [1] : vector<4x8x1xf32> to vector<4x1xf32>
    %59 = vector.shape_cast %58 : vector<4x1xf32> to vector<4x1x1xf32>
    %cst_23 = arith.constant 1.000000e-30 : f32
    %60 = vector.broadcast %cst_23 : f32 to vector<4x1x1xf32>
    %61 = arith.maximumf %59, %60 : vector<4x1x1xf32>
    %62 = vector.broadcast %61 : vector<4x1x1xf32> to vector<4x8x1xf32>
    %63 = arith.divf %57, %62 : vector<4x8x1xf32>
    %64 = vector.shape_cast %63 : vector<4x8x1xf32> to vector<4x8x1xf32>
    %65 = vector.broadcast %64 : vector<4x8x1xf32> to vector<4x8x4xf32>
    %cst_24 = arith.constant 0.000000e+00 : f32
    %66 = vector.shape_cast %7 : vector<4x8x1xi1> to vector<4x8x1xi1>
    %67 = vector.broadcast %66 : vector<4x8x1xi1> to vector<4x8x4xi1>
    %68 = vector.broadcast %cst_24 : f32 to vector<4x8x4xf32>
    %69 = arith.select %67, %46, %68 : vector<4x8x4xi1>, vector<4x8x4xf32>
    %70 = vector.extract_strided_slice %0 {offsets = [0, 0, 0], sizes = [4, 8, 4], strides = [1, 1, 1]} : vector<4x8x10xf32> to vector<4x8x4xf32>
    %71 = arith.addf %69, %70 : vector<4x8x4xf32>
    %c0_25 = arith.constant 0 : index
    %c0_26 = arith.constant 0 : index
    %c0_27 = arith.constant 0 : index
    %72 = vector.load %arg6[%c0_25, %c0_26, %c0_27] : memref<4x8x4xf32, #tpu.memory_space<vmem>>, vector<4x8x4xf32>
    tpu.vector_store %arg6[%c0_25, %c0_26, %c0_27], %71 {strides = array<i32>} : memref<4x8x4xf32, #tpu.memory_space<vmem>>, vector<4x8x4xf32>,
    %73 = arith.mulf %71, %65 : vector<4x8x4xf32>
    %cst_28 = arith.constant dense<0.000000e+00> : vector<4x4xf32>
    %74 = vector.multi_reduction <add>, %73, %cst_28 [1] : vector<4x8x4xf32> to vector<4x4xf32>
    %75 = vector.shape_cast %74 : vector<4x4xf32> to vector<4x1x4xf32>
    %c0_29 = arith.constant 0 : index
    %c0_30 = arith.constant 0 : index
    %c0_31 = arith.constant 0 : index
    %76 = vector.load %arg7[%c0_29, %c0_30, %c0_31] : memref<4x1x4xf32, #tpu.memory_space<vmem>>, vector<4x1x4xf32>
    tpu.vector_store %arg7[%c0_29, %c0_30, %c0_31], %75 {strides = array<i32>} : memref<4x1x4xf32, #tpu.memory_space<vmem>>, vector<4x1x4xf32>,
    return
  }
  func.func @transform_0(%arg0: i32) -> (i32, i32, i32) {
    %c0_i32 = arith.constant 0 : i32
    %c0_i32_0 = arith.constant 0 : i32
    %c0_i32_1 = arith.constant 0 : i32
    return %arg0, %c0_i32, %c0_i32_0 : i32, i32, i32
  }
  func.func @transform_1(%arg0: i32) -> (i32, i32, i32) {
    %c0_i32 = arith.constant 0 : i32
    %c0_i32_0 = arith.constant 0 : i32
    %c0_i32_1 = arith.constant 0 : i32
    return %arg0, %c0_i32, %c0_i32_0 : i32, i32, i32
  }
  func.func @transform_2(%arg0: i32) -> (i32, i32) {
    %c0_i32 = arith.constant 0 : i32
    %c0_i32_0 = arith.constant 0 : i32
    %c0_i32_1 = arith.constant 0 : i32
    return %c0_i32, %c0_i32_0 : i32, i32
  }
  func.func @transform_3(%arg0: i32) -> (i32, i32) {
    %c0_i32 = arith.constant 0 : i32
    %c0_i32_0 = arith.constant 0 : i32
    %c0_i32_1 = arith.constant 0 : i32
    return %c0_i32, %c0_i32_0 : i32, i32
  }
  func.func @transform_4(%arg0: i32) -> (i32, i32) {
    %c0_i32 = arith.constant 0 : i32
    %c0_i32_0 = arith.constant 0 : i32
    %c0_i32_1 = arith.constant 0 : i32
    return %c0_i32, %c0_i32_0 : i32, i32
  }
  func.func @transform_5(%arg0: i32) -> (i32, i32, i32) {
    %c0_i32 = arith.constant 0 : i32
    %c0_i32_0 = arith.constant 0 : i32
    %c0_i32_1 = arith.constant 0 : i32
    return %arg0, %c0_i32, %c0_i32_0 : i32, i32, i32
  }
  func.func @transform_6(%arg0: i32) -> (i32, i32, i32) {
    %c0_i32 = arith.constant 0 : i32
    %c0_i32_0 = arith.constant 0 : i32
    %c0_i32_1 = arith.constant 0 : i32
    return %arg0, %c0_i32, %c0_i32_0 : i32, i32, i32
  }
}

</mosaic_0001>

<llo_original>
// kernel: tpu_custom_call.1
$region0: #{tpu_custom_call.1}
  #allocation0 [shape = 'u32[]', space=smem, size = 0x4, offset = 0x4, fixed_abs, tag = 'smem constant byte address 0x4 - core index']
  #allocation1 [shape = 'u32[144,128]{1,0:T(1,128)}', space=vmem, size = 0x12000, scoped, tag = 'internal scratch']
  %s0 = inlined_call_operand.hbm [shape: f32[4,8,10], index: 0, kind: input, shape index: {}]
  %s1 = inlined_call_operand.hbm [shape: f32[4,1,65], index: 1, kind: input, shape index: {}]
  %s2 = inlined_call_operand.hbm [shape: bf16[10,64], index: 2, kind: input, shape index: {}]
  %s3 = inlined_call_operand.hbm [shape: bf16[64,5], index: 3, kind: input, shape index: {}]
  %s4 = inlined_call_operand.hbm [shape: f32[1,5], index: 4, kind: input, shape index: {}]
  %s5 = inlined_call_operand.hbm [shape: f32[4,8,4], index: 5, kind: output, shape index: {0}]
  %s6 = inlined_call_operand.hbm [shape: f32[4,1,4], index: 6, kind: output, shape index: {1}]
  %7 = xla_tuple %s5, %s6
  %s8 = sld [smem:[#allocation0]]
  $region58: #{tpu_custom_call.1} parent=0
    _
  %s10 = ssub.s32 1, %s8
  %s11 = scalar_select 0, %s10, %s8
  $region1: #{tpu_custom_call.1} parent=0
    #allocation2 [shape = 'u8[16384]{0}', space=vmem, size = 0x4000, scoped, tag = 'input window, operand 0, single buffered']
    #allocation3 [shape = 's32[1]{0}', space=sflag, size = 0x4, scoped, tag = 'scoped memory for tpu_custom_call.1']
    #allocation4 [shape = 's32[1]{0}', space=sflag, size = 0x4, scoped, tag = 'scoped memory for tpu_custom_call.1']
    #allocation5 [shape = 'u8[2048]{0}', space=vmem, size = 0x800, scoped, tag = 'input window, operand 1, single buffered']
    #allocation6 [shape = 's32[1]{0}', space=sflag, size = 0x4, scoped, tag = 'scoped memory for tpu_custom_call.1']
    #allocation7 [shape = 'u8[4096]{0}', space=vmem, size = 0x1000, scoped, tag = 'input window, operand 2, single buffered']
    #allocation8 [shape = 'u8[16384]{0}', space=vmem, size = 0x4000, scoped, tag = 'input window, operand 3, single buffered']
    #allocation9 [shape = 's32[1]{0}', space=sflag, size = 0x4, scoped, tag = 'scoped memory for tpu_custom_call.1']
    #allocation10 [shape = 'u8[512]{0}', space=vmem, size = 0x400, scoped, tag = 'input window, operand 4, single buffered']
    #allocation11 [shape = 'u8[16384]{0}', space=vmem, size = 0x4000, scoped, tag = 'output window, operand 0, single buffered']
    #allocation12 [shape = 'u8[2048]{0}', space=vmem, size = 0x800, scoped, tag = 'output window, operand 1, single buffered']
    #allocation13 [shape = 's32[1]{0}', space=sflag, size = 0x4, scoped, tag = 'scoped memory for tpu_custom_call.1']
    %12 = vsyncpa [#allocation3], 0
    %13 = vsyncpa [#allocation6], 0
    %14 = vsyncpa [#allocation9], 0
    %15 = vsyncpa [#allocation4], 0
    %16 = vsyncpa [#allocation13], 0
    // Predicated region
    $region2: #{tpu_custom_call.1} parent=1 // pred_check
      _
    $region3: #{tpu_custom_call.1} parent=1 // pred_check_branch
      %18 = sbr.rel (0) target = $region5
    $region4: #{tpu_custom_call.1} parent=1 // pred_region
      %s20 = ssub.s32 512, 512
      %21 = vsyncadd [#allocation3], %s20
      %s22 = sshll.u32 [#allocation2], 4
      %s23 = int_to_ptr.vmem [resolvable:$true] %s22
      %28 = dma.hbm_to_vmem [thread:$0]  %s0, 512, %s23, [#allocation3], 128, 128, 8
    $region5: #{tpu_custom_call.1} parent=1 // pred_fallthru
      _
    // Predicated region
    $region6: #{tpu_custom_call.1} parent=1 // pred_check
      _
    $region7: #{tpu_custom_call.1} parent=1 // pred_check_branch
      %30 = sbr.rel (0) target = $region9
    $region8: #{tpu_custom_call.1} parent=1 // pred_region
      %s32 = ssub.s32 64, 64
      %33 = vsyncadd [#allocation6], %s32
      %s34 = sshll.u32 [#allocation5], 4
      %s35 = int_to_ptr.vmem [resolvable:$true] %s34
      %40 = dma.hbm_to_vmem [thread:$0]  %s1, 64, %s35, [#allocation6], 16, 16, 1
    $region9: #{tpu_custom_call.1} parent=1 // pred_fallthru
      _
    // Predicated region
    $region10: #{tpu_custom_call.1} parent=1 // pred_check
      _
    $region11: #{tpu_custom_call.1} parent=1 // pred_check_branch
      %42 = sbr.rel (0) target = $region13
    $region12: #{tpu_custom_call.1} parent=1 // pred_region
      %s44 = ssub.s32 128, 128
      %45 = vsyncadd [#allocation6], %s44
      %s46 = sshll.u32 [#allocation7], 4
      %s47 = int_to_ptr.vmem [resolvable:$true] %s46
      %52 = dma.hbm_to_vmem [thread:$0]  %s2, 128, %s47, [#allocation6], 64, 64, 4
    $region13: #{tpu_custom_call.1} parent=1 // pred_fallthru
      _
    // Predicated region
    $region14: #{tpu_custom_call.1} parent=1 // pred_check
      _
    $region15: #{tpu_custom_call.1} parent=1 // pred_check_branch
      %54 = sbr.rel (0) target = $region17
    $region16: #{tpu_custom_call.1} parent=1 // pred_region
      %s56 = ssub.s32 512, 512
      %57 = vsyncadd [#allocation9], %s56
      %s58 = sshll.u32 [#allocation8], 4
      %s59 = int_to_ptr.vmem [resolvable:$true] %s58
      %64 = dma.hbm_to_vmem [thread:$0]  %s3, 512, %s59, [#allocation9], 64, 64, 4
    $region17: #{tpu_custom_call.1} parent=1 // pred_fallthru
      _
    // Predicated region
    $region18: #{tpu_custom_call.1} parent=1 // pred_check
      _
    $region19: #{tpu_custom_call.1} parent=1 // pred_check_branch
      %66 = sbr.rel (0) target = $region21
    $region20: #{tpu_custom_call.1} parent=1 // pred_region
      %s68 = ssub.s32 16, 16
      %69 = vsyncadd [#allocation9], %s68
      %s71 = sshll.u32 [#allocation10], 4
      %s72 = int_to_ptr.vmem [resolvable:$true] %s71
      %74 = dma.hbm_to_vmem [thread:$0]  %s4, 16, %s72, [#allocation9]
    $region21: #{tpu_custom_call.1} parent=1 // pred_fallthru
      _
    // Predicated region
    $region22: #{tpu_custom_call.1} parent=1 // pred_check
      _
    $region23: #{tpu_custom_call.1} parent=1 // pred_check_branch
      %76 = sbr.rel (0) target = $region25
    $region24: #{tpu_custom_call.1} parent=1 // pred_region
      %77 = dma.done [#allocation3], 512
    $region25: #{tpu_custom_call.1} parent=1 // pred_fallthru
      _
    // Predicated region
    $region26: #{tpu_custom_call.1} parent=1 // pred_check
      _
    $region27: #{tpu_custom_call.1} parent=1 // pred_check_branch
      %79 = sbr.rel (0) target = $region29
    $region28: #{tpu_custom_call.1} parent=1 // pred_region
      %80 = dma.done [#allocation6], 64
    $region29: #{tpu_custom_call.1} parent=1 // pred_fallthru
      _
    // Predicated region
    $region30: #{tpu_custom_call.1} parent=1 // pred_check
      _
    $region31: #{tpu_custom_call.1} parent=1 // pred_check_branch
      %82 = sbr.rel (0) target = $region33
    $region32: #{tpu_custom_call.1} parent=1 // pred_region
      %83 = dma.done [#allocation6], 128
    $region33: #{tpu_custom_call.1} parent=1 // pred_fallthru
      _
    // Predicated region
    $region34: #{tpu_custom_call.1} parent=1 // pred_check
      _
    $region35: #{tpu_custom_call.1} parent=1 // pred_check_branch
      %85 = sbr.rel (0) target = $region37
    $region36: #{tpu_custom_call.1} parent=1 // pred_region
      %86 = dma.done [#allocation9], 512
    $region37: #{tpu_custom_call.1} parent=1 // pred_fallthru
      _
    // Predicated region
    $region38: #{tpu_custom_call.1} parent=1 // pred_check
      _
    $region39: #{tpu_custom_call.1} parent=1 // pred_check_branch
      %88 = sbr.rel (0) target = $region41
    $region40: #{tpu_custom_call.1} parent=1 // pred_region
      %89 = dma.done [#allocation9], 16
    $region41: #{tpu_custom_call.1} parent=1 // pred_fallthru
      _
    %v91 = vld [vmem:[#allocation2] sm:$0xff]
    %v92 = vld [vmem:[#allocation2 + $0x8] sm:$0xff]
    %v93 = vld [vmem:[#allocation2 + $0x10] sm:$0xff]
    %v94 = vld [vmem:[#allocation2 + $0x18] sm:$0xff]
    %v95 = vld [vmem:[#allocation5] sm:$0x1]
    %v96 = vld [vmem:[#allocation5 + $0x1] sm:$0x1]
    %v97 = vld [vmem:[#allocation5 + $0x2] sm:$0x1]
    %v98 = vld [vmem:[#allocation5 + $0x3] sm:$0x1]
    %v99 = vlaneseq
    %v100 = vshrl.u32 %v99, 7
    %v101 = vcvt.s32.f32 %v100
    %v106 = vlaneseq
    %v107 = vshrl.u32 %v106, 7
    %v108 = vsub.s32 0, %v107
    %v109 = vrot.slane %v95, %v108
    %v110 = vlaneseq
    %v111 = vshrl.u32 %v110, 7
    %v112 = vsub.s32 0, %v111
    %v113 = vrot.slane %v96, %v112
    %v114 = vlaneseq
    %v115 = vshrl.u32 %v114, 7
    %v116 = vsub.s32 0, %v115
    %v117 = vrot.slane %v97, %v116
    %v118 = vlaneseq
    %v119 = vshrl.u32 %v118, 7
    %v120 = vsub.s32 0, %v119
    %v121 = vrot.slane %v98, %v120
    %vm126 = vcmp.lt.f32.partialorder %v101, %v109
    %vm127 = vcmp.lt.f32.partialorder %v101, %v113
    %vm128 = vcmp.lt.f32.partialorder %v101, %v117
    %vm129 = vcmp.lt.f32.partialorder %v101, %v121
    %vm130 = vcmask 80896
    %v131 = vsel %vm130, %v91, 0.0
    %132 = vadd.xlane.f32.xlu0 %v131
    %v133 = vpop.xlane.xlu0 %132
    %v134 = vsel %vm130, %v92, 0.0
    %135 = vadd.xlane.f32.xlu0 %v134
    %v136 = vpop.xlane.xlu0 %135
    %v137 = vsel %vm130, %v93, 0.0
    %138 = vadd.xlane.f32.xlu0 %v137
    %v139 = vpop.xlane.xlu0 %138
    %v140 = vsel %vm130, %v94, 0.0
    %141 = vadd.xlane.f32.xlu0 %v140
    %v142 = vpop.xlane.xlu0 %141
    %v143 = vmul.f32 %v133, 0.1
    %v144 = vmul.f32 %v136, 0.1
    %v145 = vmul.f32 %v139, 0.1
    %v146 = vmul.f32 %v142, 0.1
    %v147 = vsub.f32 %v91, %v143
    %v148 = vsub.f32 %v92, %v144
    %v149 = vsub.f32 %v93, %v145
    %v150 = vsub.f32 %v94, %v146
    %v151 = vmul.f32 %v147, %v147
    %v152 = vmul.f32 %v148, %v148
    %v153 = vmul.f32 %v149, %v149
    %v154 = vmul.f32 %v150, %v150
    %v155 = vsel %vm130, %v151, 0.0
    %156 = vadd.xlane.f32.xlu0 %v155
    %v157 = vpop.xlane.xlu0 %156
    %v158 = vsel %vm130, %v152, 0.0
    %159 = vadd.xlane.f32.xlu0 %v158
    %v160 = vpop.xlane.xlu0 %159
    %v161 = vsel %vm130, %v153, 0.0
    %162 = vadd.xlane.f32.xlu0 %v161
    %v163 = vpop.xlane.xlu0 %162
    %v164 = vsel %vm130, %v154, 0.0
    %165 = vadd.xlane.f32.xlu0 %v164
    %v166 = vpop.xlane.xlu0 %165
    %v167 = vmul.f32 %v157, 0.1
    %v168 = vmul.f32 %v160, 0.1
    %v169 = vmul.f32 %v163, 0.1
    %v170 = vmul.f32 %v166, 0.1
    %v171 = vadd.f32 %v167, 1e-05
    %v172 = vadd.f32 %v168, 1e-05
    %v173 = vadd.f32 %v169, 1e-05
    %v174 = vadd.f32 %v170, 1e-05
    %v175 = vrsqrt.pop %v171
    %v176 = vrsqrt.pop %v172
    %v177 = vrsqrt.pop %v173
    %v178 = vrsqrt.pop %v174
    %v179 = vmul.f32 %v147, %v175
    %v180 = vmul.f32 %v148, %v176
    %v181 = vmul.f32 %v149, %v177
    %v182 = vmul.f32 %v150, %v178
    %v183 = vpack.c.bf16 %v180, %v179
    %v184 = vpack.c.bf16 %v182, %v181
    %v185 = vld [vmem:[#allocation7] sm:$0xf]
    %v186 = vld [vmem:[#allocation7 + $0x4] sm:$0x1]
    %v189 = vunpack.c.l.b16 %v185
    %v190 = vunpack.c.l.b16 %v186
    %v191 = vpack.c.b16 %v190, %v189
    %v193 = vsel %vm130, %v183, 0
    %v196 = vsel %vm130, %v184, 0
    %vm198 = vcmask 1044480
    %v200 = vsel %vm198, %v191, 0
    %202 = vmatprep.subr.bf16.mxu0 0
    %203 = vmatpush1.bf16.msra.mxu0 %v200
    %204 = vmatprep.subr.bf16.mxu0 0
    %205 = vmatpush1.bf16.msra.mxu0 0
    %206 = vmatprep.subr.bf16.mxu0 0
    %207 = vmatpush1.bf16.msra.mxu0 0
    %208 = vmatprep.subr.bf16.mxu0 0
    %209 = vmatpush1.bf16.msra.mxu0 0
    %210 = vmatprep.subr.bf16.mxu0 0
    %211 = vmatpush1.bf16.msra.mxu0 0
    %212 = vmatprep.subr.bf16.mxu0 0
    %213 = vmatpush1.bf16.msra.mxu0 0
    %214 = vmatprep.subr.bf16.mxu0 0
    %215 = vmatpush1.bf16.msra.mxu0 0
    %216 = vmatprep.subr.bf16.mxu0 0
    %217 = vmatpush1.bf16.msra.mxu0 0
    %218 = vmatprep.subr.bf16.mxu0 0
    %219 = vmatpush1.bf16.msra.mxu0 0
    %220 = vmatprep.subr.bf16.mxu0 0
    %221 = vmatpush1.bf16.msra.mxu0 0
    %222 = vmatprep.subr.bf16.mxu0 0
    %223 = vmatpush1.bf16.msra.mxu0 0
    %224 = vmatprep.subr.bf16.mxu0 0
    %225 = vmatpush1.bf16.msra.mxu0 0
    %226 = vmatprep.subr.bf16.mxu0 0
    %227 = vmatpush1.bf16.msra.mxu0 0
    %228 = vmatprep.subr.bf16.mxu0 0
    %229 = vmatpush1.bf16.msra.mxu0 0
    %230 = vmatprep.subr.bf16.mxu0 0
    %231 = vmatpush1.bf16.msra.mxu0 0
    %232 = vmatprep.subr.bf16.mxu0 0
    %233 = vmatpush1.bf16.msra.mxu0 0
    %234 = vmatprep.mubr.bf16.mxu0 0
    %235 = vmatmul.mubr.bf16.gmra.mrb[0].mxu0 %v193
    %v236 = vpop.f32.mrb[0].mxu0
    %v237 = vadd.f32 0.0, %v236
    %v238 = vpop.f32.mrb[0].mxu0
    %v239 = vpop.f32.mrb[0].mxu0
    %v240 = vadd.f32 0.0, %v239
    %v241 = vpop.f32.mrb[0].mxu0
    %242 = vmatprep.mubr.bf16.mxu0 0
    %243 = vmatmul.mubr.bf16.gmra.mrb[0].mxu0 %v196
    %v244 = vpop.f32.mrb[0].mxu0
    %v245 = vadd.f32 0.0, %v244
    %v246 = vpop.f32.mrb[0].mxu0
    %v247 = vpop.f32.mrb[0].mxu0
    %v248 = vadd.f32 0.0, %v247
    %v249 = vpop.f32.mrb[0].mxu0
    %250 = vdwg.mxu0
    %v251 = vadd.f32 %v237, %v109
    %v252 = vadd.f32 %v240, %v113
    %v253 = vadd.f32 %v245, %v117
    %v254 = vadd.f32 %v248, %v121
    %v255 = vxor.u32 %v251, 2147483648
    %v256 = vxor.u32 %v252, 2147483648
    %v257 = vxor.u32 %v253, 2147483648
    %v258 = vxor.u32 %v254, 2147483648
    %v259 = vmul.f32 %v255, 1.442695
    %v260 = vpow.pop %v259
    %v261 = vmul.f32 %v256, 1.442695
    %v262 = vpow.pop %v261
    %v263 = vmul.f32 %v257, 1.442695
    %v264 = vpow.pop %v263
    %v265 = vmul.f32 %v258, 1.442695
    %v266 = vpow.pop %v265
    %v267 = vadd.f32 %v260, 1.0
    %v268 = vadd.f32 %v262, 1.0
    %v269 = vadd.f32 %v264, 1.0
    %v270 = vadd.f32 %v266, 1.0
    %v271 = vrcp.pop %v267
    %v272 = vmul.f32 1.0, %v271
    %v273 = vrcp.pop %v268
    %v274 = vmul.f32 1.0, %v273
    %v275 = vrcp.pop %v269
    %v276 = vmul.f32 1.0, %v275
    %v277 = vrcp.pop %v270
    %v278 = vmul.f32 1.0, %v277
    %v279 = vmul.f32 %v251, %v272
    %v280 = vmul.f32 %v252, %v274
    %v281 = vmul.f32 %v253, %v276
    %v282 = vmul.f32 %v254, %v278
    %v283 = vpack.c.bf16 %v280, %v279
    %v284 = vpack.c.bf16 %v282, %v281
    %v285 = vld [vmem:[#allocation8] sm:$0xf]
    %v286 = vld [vmem:[#allocation8 + $0x4] sm:$0xf]
    %v287 = vld [vmem:[#allocation8 + $0x8] sm:$0xf]
    %v288 = vld [vmem:[#allocation8 + $0xc] sm:$0xf]
    %v289 = vld [vmem:[#allocation8 + $0x10] sm:$0xf]
    %v290 = vld [vmem:[#allocation8 + $0x14] sm:$0xf]
    %v291 = vld [vmem:[#allocation8 + $0x18] sm:$0xf]
    %v292 = vld [vmem:[#allocation8 + $0x1c] sm:$0xf]
    %v293 = vld [vmem:[#allocation10] sm:$0x1]
    %v295 = vlaneseq
    %v296 = vshrl.u32 %v295, 7
    %v297 = vsub.s32 0, %v296
    %v298 = vrot.slane %v293, %v297
    %v308 = vunpack.c.l.b16 %v285
    %v309 = vunpack.c.l.b16 %v286
    %v310 = vunpack.c.l.b16 %v287
    %v311 = vunpack.c.l.b16 %v288
    %v312 = vunpack.c.l.b16 %v289
    %v313 = vunpack.c.l.b16 %v290
    %v314 = vunpack.c.l.b16 %v291
    %v315 = vunpack.c.l.b16 %v292
    %v316 = vpack.c.b16 %v309, %v308
    %v317 = vpack.c.b16 %v311, %v310
    %v318 = vpack.c.b16 %v313, %v312
    %v319 = vpack.c.b16 %v315, %v314
    %vm324 = vcmask 523264
    %v326 = vsel %vm324, %v283, 0
    %v329 = vsel %vm324, %v284, 0
    %331 = vmatprep.subr.bf16.mxu0 0
    %332 = vmatpush1.bf16.msra.mxu0 %v316
    %333 = vmatprep.subr.bf16.mxu0 0
    %334 = vmatpush1.bf16.msra.mxu0 %v317
    %335 = vmatprep.subr.bf16.mxu0 0
    %336 = vmatpush1.bf16.msra.mxu0 %v318
    %337 = vmatprep.subr.bf16.mxu0 0
    %338 = vmatpush1.bf16.msra.mxu0 %v319
    %339 = vmatprep.subr.bf16.mxu0 0
    %340 = vmatpush1.bf16.msra.mxu0 0
    %341 = vmatprep.subr.bf16.mxu0 0
    %342 = vmatpush1.bf16.msra.mxu0 0
    %343 = vmatprep.subr.bf16.mxu0 0
    %344 = vmatpush1.bf16.msra.mxu0 0
    %345 = vmatprep.subr.bf16.mxu0 0
    %346 = vmatpush1.bf16.msra.mxu0 0
    %347 = vmatprep.subr.bf16.mxu0 0
    %348 = vmatpush1.bf16.msra.mxu0 0
    %349 = vmatprep.subr.bf16.mxu0 0
    %350 = vmatpush1.bf16.msra.mxu0 0
    %351 = vmatprep.subr.bf16.mxu0 0
    %352 = vmatpush1.bf16.msra.mxu0 0
    %353 = vmatprep.subr.bf16.mxu0 0
    %354 = vmatpush1.bf16.msra.mxu0 0
    %355 = vmatprep.subr.bf16.mxu0 0
    %356 = vmatpush1.bf16.msra.mxu0 0
    %357 = vmatprep.subr.bf16.mxu0 0
    %358 = vmatpush1.bf16.msra.mxu0 0
    %359 = vmatprep.subr.bf16.mxu0 0
    %360 = vmatpush1.bf16.msra.mxu0 0
    %361 = vmatprep.subr.bf16.mxu0 0
    %362 = vmatpush1.bf16.msra.mxu0 0
    %363 = vmatprep.mubr.bf16.mxu0 0
    %364 = vmatmul.mubr.bf16.gmra.mrb[0].mxu0 %v326
    %v365 = vpop.f32.mrb[0].mxu0
    %v366 = vadd.f32 %v298, %v365
    %v367 = vpop.f32.mrb[0].mxu0
    %v368 = vpop.f32.mrb[0].mxu0
    %v369 = vadd.f32 %v298, %v368
    %v370 = vpop.f32.mrb[0].mxu0
    %371 = vmatprep.mubr.bf16.mxu0 0
    %372 = vmatmul.mubr.bf16.gmra.mrb[0].mxu0 %v329
    %v373 = vpop.f32.mrb[0].mxu0
    %v374 = vadd.f32 %v298, %v373
    %v375 = vpop.f32.mrb[0].mxu0
    %v376 = vpop.f32.mrb[0].mxu0
    %v377 = vadd.f32 %v298, %v376
    %v378 = vpop.f32.mrb[0].mxu0
    %379 = vdwg.mxu0
    %384 = vrot.lane.b32.xlu0 %v366, 64
    %v385 = vpop.permute.xlu0 %384
    %386 = vrot.lane.b32.xlu0 %v369, 64
    %v387 = vpop.permute.xlu0 %386
    %388 = vrot.lane.b32.xlu0 %v374, 64
    %v389 = vpop.permute.xlu0 %388
    %390 = vrot.lane.b32.xlu0 %v377, 64
    %v391 = vpop.permute.xlu0 %390
    %v396 = vsel %vm126, %v385, -inf
    %v397 = vsel %vm127, %v387, -inf
    %v398 = vsel %vm128, %v389, -inf
    %v399 = vsel %vm129, %v391, -inf
    %vm400 = vcmask 531968
    %v401 = vsel %vm400, %v396, -inf
    %v402 = vrot.slane %v401, 4
    %v403 = vmax.f32 %v401, %v402
    %v404 = vrot.slane %v403, 2
    %v405 = vmax.f32 %v403, %v404
    %v406 = vrot.slane %v405, 1
    %v407 = vmax.f32 %v405, %v406
    %v408 = vsel %vm400, %v397, -inf
    %v409 = vrot.slane %v408, 4
    %v410 = vmax.f32 %v408, %v409
    %v411 = vrot.slane %v410, 2
    %v412 = vmax.f32 %v410, %v411
    %v413 = vrot.slane %v412, 1
    %v414 = vmax.f32 %v412, %v413
    %v415 = vsel %vm400, %v398, -inf
    %v416 = vrot.slane %v415, 4
    %v417 = vmax.f32 %v415, %v416
    %v418 = vrot.slane %v417, 2
    %v419 = vmax.f32 %v417, %v418
    %v420 = vrot.slane %v419, 1
    %v421 = vmax.f32 %v419, %v420
    %v422 = vsel %vm400, %v399, -inf
    %v423 = vrot.slane %v422, 4
    %v424 = vmax.f32 %v422, %v423
    %v425 = vrot.slane %v424, 2
    %v426 = vmax.f32 %v424, %v425
    %v427 = vrot.slane %v426, 1
    %v428 = vmax.f32 %v426, %v427
    %v429 = vmax.f32 %v407, -1e+30
    %v430 = vmax.f32 %v414, -1e+30
    %v431 = vmax.f32 %v421, -1e+30
    %v432 = vmax.f32 %v428, -1e+30
    %437 = vrot.lane.b32.xlu0 %v429, 64
    %v438 = vpop.permute.xlu0 %437
    %439 = vrot.lane.b32.xlu0 %v430, 64
    %v440 = vpop.permute.xlu0 %439
    %441 = vrot.lane.b32.xlu0 %v431, 64
    %v442 = vpop.permute.xlu0 %441
    %443 = vrot.lane.b32.xlu0 %v432, 64
    %v444 = vpop.permute.xlu0 %443
    %v449 = vsub.f32 %v366, %v438
    %v450 = vsub.f32 %v369, %v440
    %v451 = vsub.f32 %v374, %v442
    %v452 = vsub.f32 %v377, %v444
    %v453 = vmul.f32 %v449, 1.442695
    %v454 = vpow.pop %v453
    %v455 = vmul.f32 %v450, 1.442695
    %v456 = vpow.pop %v455
    %v457 = vmul.f32 %v451, 1.442695
    %v458 = vpow.pop %v457
    %v459 = vmul.f32 %v452, 1.442695
    %v460 = vpow.pop %v459
    %465 = vrot.lane.b32.xlu0 %v454, 64
    %v466 = vpop.permute.xlu0 %465
    %467 = vrot.lane.b32.xlu0 %v456, 64
    %v468 = vpop.permute.xlu0 %467
    %469 = vrot.lane.b32.xlu0 %v458, 64
    %v470 = vpop.permute.xlu0 %469
    %471 = vrot.lane.b32.xlu0 %v460, 64
    %v472 = vpop.permute.xlu0 %471
    %v477 = vsel %vm126, %v466, 0.0
    %v478 = vsel %vm127, %v468, 0.0
    %v479 = vsel %vm128, %v470, 0.0
    %v480 = vsel %vm129, %v472, 0.0
    %v481 = vsel %vm400, %v477, 0.0
    %v482 = vrot.slane %v481, 4
    %v483 = vadd.f32 %v481, %v482
    %v484 = vrot.slane %v483, 2
    %v485 = vadd.f32 %v483, %v484
    %v486 = vrot.slane %v485, 1
    %v487 = vadd.f32 %v485, %v486
    %v488 = vsel %vm400, %v478, 0.0
    %v489 = vrot.slane %v488, 4
    %v490 = vadd.f32 %v488, %v489
    %v491 = vrot.slane %v490, 2
    %v492 = vadd.f32 %v490, %v491
    %v493 = vrot.slane %v492, 1
    %v494 = vadd.f32 %v492, %v493
    %v495 = vsel %vm400, %v479, 0.0
    %v496 = vrot.slane %v495, 4
    %v497 = vadd.f32 %v495, %v496
    %v498 = vrot.slane %v497, 2
    %v499 = vadd.f32 %v497, %v498
    %v500 = vrot.slane %v499, 1
    %v501 = vadd.f32 %v499, %v500
    %v502 = vsel %vm400, %v480, 0.0
    %v503 = vrot.slane %v502, 4
    %v504 = vadd.f32 %v502, %v503
    %v505 = vrot.slane %v504, 2
    %v506 = vadd.f32 %v504, %v505
    %v507 = vrot.slane %v506, 1
    %v508 = vadd.f32 %v506, %v507
    %v509 = vmax.f32 %v487, 1e-30
    %v510 = vmax.f32 %v494, 1e-30
    %v511 = vmax.f32 %v501, 1e-30
    %v512 = vmax.f32 %v508, 1e-30
    %v513 = vrcp.pop %v509
    %v514 = vmul.f32 %v477, %v513
    %v515 = vrcp.pop %v510
    %v516 = vmul.f32 %v478, %v515
    %v517 = vrcp.pop %v511
    %v518 = vmul.f32 %v479, %v517
    %v519 = vrcp.pop %v512
    %v520 = vmul.f32 %v480, %v519
    %522 = vset.pattern.permute.xlu0 64
    %523 = vperm.xlu0 %522, %v514
    %v524 = vpop.permute.xlu0 %523
    %527 = vset.pattern.permute.xlu0 64
    %528 = vperm.xlu0 %527, %v516
    %v529 = vpop.permute.xlu0 %528
    %532 = vset.pattern.permute.xlu0 64
    %533 = vperm.xlu0 %532, %v518
    %v534 = vpop.permute.xlu0 %533
    %537 = vset.pattern.permute.xlu0 64
    %538 = vperm.xlu0 %537, %v520
    %v539 = vpop.permute.xlu0 %538
    %v541 = vsel %vm126, 1, 0
    %v542 = vsel %vm127, 1, 0
    %v543 = vsel %vm128, 1, 0
    %v544 = vsel %vm129, 1, 0
    %545 = vset.pattern.permute.xlu0 64
    %546 = vperm.xlu0 %545, %v541
    %v547 = vpop.permute.xlu0 %546
    %548 = vset.pattern.permute.xlu0 64
    %549 = vperm.xlu0 %548, %v542
    %v550 = vpop.permute.xlu0 %549
    %551 = vset.pattern.permute.xlu0 64
    %552 = vperm.xlu0 %551, %v543
    %v553 = vpop.permute.xlu0 %552
    %554 = vset.pattern.permute.xlu0 64
    %555 = vperm.xlu0 %554, %v544
    %v556 = vpop.permute.xlu0 %555
    %vm557 = vcmp.eq.s32.totalorder %v547, 1
    %vm558 = vcmp.eq.s32.totalorder %v550, 1
    %vm559 = vcmp.eq.s32.totalorder %v553, 1
    %vm560 = vcmp.eq.s32.totalorder %v556, 1
    %v561 = vsel %vm557, %v366, 0.0
    %v562 = vsel %vm558, %v369, 0.0
    %v563 = vsel %vm559, %v374, 0.0
    %v564 = vsel %vm560, %v377, 0.0
    %569 = vrot.lane.b32.xlu0 %v91, 1
    %v570 = vpop.permute.xlu0 %569
    %571 = vrot.lane.b32.xlu0 %v92, 1
    %v572 = vpop.permute.xlu0 %571
    %573 = vrot.lane.b32.xlu0 %v93, 1
    %v574 = vpop.permute.xlu0 %573
    %575 = vrot.lane.b32.xlu0 %v94, 1
    %v576 = vpop.permute.xlu0 %575
    %v581 = vadd.f32 %v561, %v570
    %v582 = vadd.f32 %v562, %v572
    %v583 = vadd.f32 %v563, %v574
    %v584 = vadd.f32 %v564, %v576
    %589 = vrot.lane.b32.xlu0 %v581, 127
    %v590 = vpop.permute.xlu0 %589
    %591 = vrot.lane.b32.xlu0 %v582, 127
    %v592 = vpop.permute.xlu0 %591
    %593 = vrot.lane.b32.xlu0 %v583, 127
    %v594 = vpop.permute.xlu0 %593
    %595 = vrot.lane.b32.xlu0 %v584, 127
    %v596 = vpop.permute.xlu0 %595
    %vm601 = vcmask 31744
    %602 = vst.msk [vmem:[#allocation11] sm:$0xff] %vm601, %v590
    %603 = vst.msk [vmem:[#allocation11 + $0x8] sm:$0xff] %vm601, %v592
    %604 = vst.msk [vmem:[#allocation11 + $0x10] sm:$0xff] %vm601, %v594
    %605 = vst.msk [vmem:[#allocation11 + $0x18] sm:$0xff] %vm601, %v596
    %v606 = vmul.f32 %v581, %v524
    %v607 = vmul.f32 %v582, %v529
    %v608 = vmul.f32 %v583, %v534
    %v609 = vmul.f32 %v584, %v539
    %vm610 = vcmask 39944
    %v611 = vsel %vm610, %v606, 0.0
    %v612 = vrot.slane %v611, 4
    %v613 = vadd.f32 %v611, %v612
    %v614 = vrot.slane %v613, 2
    %v615 = vadd.f32 %v613, %v614
    %v616 = vrot.slane %v615, 1
    %v617 = vadd.f32 %v615, %v616
    %v618 = vsel %vm610, %v607, 0.0
    %v619 = vrot.slane %v618, 4
    %v620 = vadd.f32 %v618, %v619
    %v621 = vrot.slane %v620, 2
    %v622 = vadd.f32 %v620, %v621
    %v623 = vrot.slane %v622, 1
    %v624 = vadd.f32 %v622, %v623
    %v625 = vsel %vm610, %v608, 0.0
    %v626 = vrot.slane %v625, 4
    %v627 = vadd.f32 %v625, %v626
    %v628 = vrot.slane %v627, 2
    %v629 = vadd.f32 %v627, %v628
    %v630 = vrot.slane %v629, 1
    %v631 = vadd.f32 %v629, %v630
    %v632 = vsel %vm610, %v609, 0.0
    %v633 = vrot.slane %v632, 4
    %v634 = vadd.f32 %v632, %v633
    %v635 = vrot.slane %v634, 2
    %v636 = vadd.f32 %v634, %v635
    %v637 = vrot.slane %v636, 1
    %v638 = vadd.f32 %v636, %v637
    %643 = vrot.lane.b32.xlu0 %v617, 127
    %v644 = vpop.permute.xlu0 %643
    %645 = vrot.lane.b32.xlu0 %v624, 127
    %v646 = vpop.permute.xlu0 %645
    %647 = vrot.lane.b32.xlu0 %v631, 127
    %v648 = vpop.permute.xlu0 %647
    %649 = vrot.lane.b32.xlu0 %v638, 127
    %v650 = vpop.permute.xlu0 %649
    %vm655 = vcmask 24576
    %656 = vst.msk [vmem:[#allocation12] sm:$0x1] %vm655, %v644
    %657 = vst.msk [vmem:[#allocation12 + $0x1] sm:$0x1] %vm655, %v646
    %658 = vst.msk [vmem:[#allocation12 + $0x2] sm:$0x1] %vm655, %v648
    %659 = vst.msk [vmem:[#allocation12 + $0x3] sm:$0x1] %vm655, %v650
    // Predicated region
    $region42: #{tpu_custom_call.1} parent=1 // pred_check
      _
    $region43: #{tpu_custom_call.1} parent=1 // pred_check_branch
      %661 = sbr.rel (0) target = $region45
    $region44: #{tpu_custom_call.1} parent=1 // pred_region
      %s663 = ssub.s32 512, 512
      %664 = vsyncadd [#allocation4], %s663
      %s665 = sshll.u32 [#allocation11], 4
      %s666 = int_to_ptr.vmem [resolvable:$true] %s665
      %671 = dma.vmem_to_hbm [thread:$0]  %s666, 512, %s5, [#allocation4], 128, 128, 8
    $region45: #{tpu_custom_call.1} parent=1 // pred_fallthru
      _
    // Predicated region
    $region46: #{tpu_custom_call.1} parent=1 // pred_check
      _
    $region47: #{tpu_custom_call.1} parent=1 // pred_check_branch
      %673 = sbr.rel (0) target = $region49
    $region48: #{tpu_custom_call.1} parent=1 // pred_region
      %s675 = ssub.s32 64, 64
      %676 = vsyncadd [#allocation13], %s675
      %s677 = sshll.u32 [#allocation12], 4
      %s678 = int_to_ptr.vmem [resolvable:$true] %s677
      %683 = dma.vmem_to_hbm [thread:$0]  %s678, 64, %s6, [#allocation13], 16, 16, 1
    $region49: #{tpu_custom_call.1} parent=1 // pred_fallthru
      _
    // Predicated region
    $region50: #{tpu_custom_call.1} parent=1 // pred_check
      _
    $region51: #{tpu_custom_call.1} parent=1 // pred_check_branch
      %685 = sbr.rel (0) target = $region53
    $region52: #{tpu_custom_call.1} parent=1 // pred_region
      %686 = dma.done [#allocation4], 512
    $region53: #{tpu_custom_call.1} parent=1 // pred_fallthru
      _
    // Predicated region
    $region54: #{tpu_custom_call.1} parent=1 // pred_check
      _
    $region55: #{tpu_custom_call.1} parent=1 // pred_check_branch
      %688 = sbr.rel (0) target = $region57
    $region56: #{tpu_custom_call.1} parent=1 // pred_region
      %689 = dma.done [#allocation13], 64
    $region57: #{tpu_custom_call.1} parent=1 // pred_fallthru
      _
    %690 = vsyncpa [#allocation3], 1
    %691 = vsyncpa [#allocation6], 1
    %692 = vsyncpa [#allocation9], 1
    %693 = vsyncpa [#allocation4], 1
    %694 = vsyncpa [#allocation13], 1

</llo_original>
